<compile_context>
chip_gen: v6e
topology: v6e:2x2x1
jax: 0.10.0
libtpu: 0.0.40
codegen_flags: <defaults>
</compile_context>

<pallas_src>
import math
import jax
import jax.numpy as jnp
from jax import lax
from jax.experimental import pallas as pl
from jax.experimental.pallas import tpu as pltpu

INPUT_SIZE = 1
HIDDEN = 32     # module default is 50; 32 chosen so 4*H = 128 is lane-aligned
OUTPUT = 1


def lstm_linear_kernel(x_ref, wih_ref, whh_ref, b_ref, wlin_ref, blin_ref,
                       out_ref, pre_ref):
    """One grid step = the full recurrence for one batch block.

    x_ref   : (S, Bb, F)   sequence slab for this batch block (VMEM)
    wih_ref : (F, 4H)      input->gates weights (already transposed)
    whh_ref : (H, 4H)      hidden->gates weights (already transposed)
    b_ref   : (1, 4H)      combined bias (b_ih + b_hh)
    wlin_ref: (H, O)       final Linear weight (transposed)
    blin_ref: (1, O)       final Linear bias
    out_ref : (Bb, O)      predictions[-1] for this batch block
    pre_ref : (S, Bb, 4H)  VMEM scratch holding the hoisted input projection
    """
    seq_len, bb, feat = x_ref.shape
    hidden = whh_ref.shape[0]
    h4 = whh_ref.shape[1]

    # ---- Hoisted input projection: pre_gates[t] = x[t] @ W_ih^T + (b_ih + b_hh), all t ----
    if feat == 1:
        # F == 1: the "matmul" is a pure VPU broadcast multiply (no K=1 MXU pass).
        pre = x_ref[...] * wih_ref[...].reshape(1, 1, h4) + b_ref[...]
    else:
        pre = (jnp.dot(x_ref[...].reshape(seq_len * bb, feat), wih_ref[...],
                       preferred_element_type=jnp.float32)
               .reshape(seq_len, bb, h4) + b_ref[...])
    pre_ref[...] = pre  # lane-dense (last dim = 4H) slab, loaded per step with one vld

    # ---- Recurrence: h/c carried in vregs, loop unrolled (seq is static) ----
    h0 = jnp.zeros((bb, hidden), jnp.float32)
    c0 = jnp.zeros((bb, hidden), jnp.float32)

    def step(t, carry):
        h, c = carry
        gates = (jnp.dot(h, whh_ref[...], preferred_element_type=jnp.float32)
                 + pre_ref[t])                                   # (Bb, 4H)
        # One wide sigmoid over the whole 4H slab + one tanh on the g slice.
        sig = jax.nn.sigmoid(gates)
        g_g = jnp.tanh(gates[:, 2 * hidden:3 * hidden])
        i_g = sig[:, 0:hidden]
        f_g = sig[:, hidden:2 * hidden]
        o_g = sig[:, 3 * hidden:4 * hidden]
        c_new = f_g * c + i_g * g_g
        h_new = o_g * jnp.tanh(c_new)
        return (h_new, c_new)

    unroll = True if seq_len <= 32 else 8
    h_fin, _ = lax.fori_loop(0, seq_len, step, (h0, c0), unroll=unroll)

    # predictions[-1] only depends on the last hidden state.
    out_ref[...] = (jnp.dot(h_fin, wlin_ref[...], preferred_element_type=jnp.float32)
                    + blin_ref[...])


def init_params(key, input_size=INPUT_SIZE, hidden=HIDDEN, output=OUTPUT):
    """Deterministic parameter init mirroring PyTorch's U(-1/sqrt(H), 1/sqrt(H))."""
    k = 1.0 / math.sqrt(hidden)
    ks = jax.random.split(key, 6)
    return {
        "w_ih": jax.random.uniform(ks[0], (4 * hidden, input_size), jnp.float32, -k, k),
        "w_hh": jax.random.uniform(ks[1], (4 * hidden, hidden), jnp.float32, -k, k),
        "b_ih": jax.random.uniform(ks[2], (4 * hidden,), jnp.float32, -k, k),
        "b_hh": jax.random.uniform(ks[3], (4 * hidden,), jnp.float32, -k, k),
        "w_lin": jax.random.uniform(ks[4], (output, hidden), jnp.float32, -k, k),
        "b_lin": jax.random.uniform(ks[5], (output,), jnp.float32, -k, k),
    }


def lstm_forward(inputs, params, input_size=INPUT_SIZE, hidden=HIDDEN, output=OUTPUT):
    batch = inputs.shape[0]
    seq = inputs.shape[1]

    # Exactly matches torch `.view(seq, batch, features)` on a contiguous (batch, seq[, feat])
    # tensor: a row-major reshape (NOT a transpose).
    x_seq = jnp.reshape(inputs.astype(jnp.float32), (seq, batch, input_size))

    w_ih = params["w_ih"].T                                  # (F, 4H)
    w_hh = params["w_hh"].T                                  # (H, 4H)
    b = (params["b_ih"] + params["b_hh"]).reshape(1, 4 * hidden)
    w_lin = params["w_lin"].T                                # (H, O)
    b_lin = params["b_lin"].reshape(1, output)

    # Batch blocking: single block for small batches; 256-row blocks (sublane/lane friendly)
    # for large batches so the "parallel" grid axis can shard across v7x's two TensorCores.
    # TODO(synk): for very long sequences additionally block the time axis so the (S, Bb, 4H)
    #             pre-gate scratch stays well under v7x's 64 MiB VMEM.
    if batch <= 256:
        block_b, pad_b = batch, batch
    else:
        block_b = 256
        pad_b = pl.cdiv(batch, block_b) * block_b
    if pad_b != batch:
        x_seq = jnp.pad(x_seq, ((0, 0), (0, pad_b - batch), (0, 0)))
    grid = (pad_b // block_b,)

    out = pl.pallas_call(
        lstm_linear_kernel,
        out_shape=jax.ShapeDtypeStruct((pad_b, output), jnp.float32),
        grid_spec=pltpu.PrefetchScalarGridSpec(
            num_scalar_prefetch=0,
            grid=grid,
            in_specs=[
                pl.BlockSpec((seq, block_b, input_size), lambda bi: (0, bi, 0)),
                pl.BlockSpec((input_size, 4 * hidden), lambda bi: (0, 0)),
                pl.BlockSpec((hidden, 4 * hidden), lambda bi: (0, 0)),
                pl.BlockSpec((1, 4 * hidden), lambda bi: (0, 0)),
                pl.BlockSpec((hidden, output), lambda bi: (0, 0)),
                pl.BlockSpec((1, output), lambda bi: (0, 0)),
            ],
            out_specs=pl.BlockSpec((block_b, output), lambda bi: (bi, 0)),
            scratch_shapes=[
                pltpu.VMEM((seq, block_b, 4 * hidden), jnp.float32),  # hoisted pre-gates
            ],
        ),
        compiler_params=pltpu.CompilerParams(
            dimension_semantics=("parallel",)),
    )(x_seq, w_ih, w_hh, b, w_lin, b_lin)

    return out[:batch]  # (batch, output_size) == predictions[-1]


if __name__ == "__main__":
    key = jax.random.PRNGKey(0)
    k_param, k_input = jax.random.split(key)

    params = init_params(k_param)

    batch, seq = 2, 8
    inputs = jax.random.normal(k_input, (batch, seq), dtype=jnp.float32)

    out = lstm_forward(inputs, params)
    out = jax.block_until_ready(out)
    assert out.shape == (batch, OUTPUT)
    print("KERNEL_OK")
</pallas_src>

<mosaic_0001>
module attributes {stable_mosaic.version = 11 : i64} {
  func.func @lstm_linear_kernel(%arg0: i32, %arg1: memref<8x2x1xf32, #tpu.memory_space<vmem>>, %arg2: memref<1x128xf32, #tpu.memory_space<vmem>>, %arg3: memref<32x128xf32, #tpu.memory_space<vmem>>, %arg4: memref<1x128xf32, #tpu.memory_space<vmem>>, %arg5: memref<32x1xf32, #tpu.memory_space<vmem>>, %arg6: memref<1x1xf32, #tpu.memory_space<vmem>>, %arg7: memref<2x1xf32, #tpu.memory_space<vmem>>, %arg8: memref<8x2x128xf32, #tpu.memory_space<vmem>>) attributes {dimension_semantics = [#tpu.dimension_semantics<parallel>], iteration_bounds = array<i64: 1>, scalar_prefetch = 0 : i64, scratch_operands = 1 : i64, tpu.core_type = #tpu.core_type<tc>, window_params = [{transform_indices = @transform_0, window_bounds = array<i64: 8, 2, 1>}, {pipeline_mode = #tpu.pipeline_mode<synchronous>, transform_indices = @transform_1, window_bounds = array<i64: 1, 128>}, {pipeline_mode = #tpu.pipeline_mode<synchronous>, transform_indices = @transform_2, window_bounds = array<i64: 32, 128>}, {pipeline_mode = #tpu.pipeline_mode<synchronous>, transform_indices = @transform_3, window_bounds = array<i64: 1, 128>}, {pipeline_mode = #tpu.pipeline_mode<synchronous>, transform_indices = @transform_4, window_bounds = array<i64: 32, 1>}, {pipeline_mode = #tpu.pipeline_mode<synchronous>, transform_indices = @transform_5, window_bounds = array<i64: 1, 1>}, {transform_indices = @transform_6, window_bounds = array<i64: 2, 1>}]} {
    %c0 = arith.constant 0 : index
    %c0_0 = arith.constant 0 : index
    %c0_1 = arith.constant 0 : index
    %0 = vector.load %arg1[%c0, %c0_0, %c0_1] : memref<8x2x1xf32, #tpu.memory_space<vmem>>, vector<8x2x1xf32>
    %c0_2 = arith.constant 0 : index
    %c0_3 = arith.constant 0 : index
    %1 = vector.load %arg2[%c0_2, %c0_3] : memref<1x128xf32, #tpu.memory_space<vmem>>, vector<1x128xf32>
    %2 = vector.shape_cast %1 : vector<1x128xf32> to vector<1x1x128xf32>
    %3 = vector.broadcast %0 : vector<8x2x1xf32> to vector<8x2x128xf32>
    %4 = vector.broadcast %2 : vector<1x1x128xf32> to vector<8x2x128xf32>
    %5 = arith.mulf %3, %4 : vector<8x2x128xf32>
    %c0_4 = arith.constant 0 : index
    %c0_5 = arith.constant 0 : index
    %6 = vector.load %arg4[%c0_4, %c0_5] : memref<1x128xf32, #tpu.memory_space<vmem>>, vector<1x128xf32>
    %7 = vector.shape_cast %6 : vector<1x128xf32> to vector<1x1x128xf32>
    %8 = vector.broadcast %7 : vector<1x1x128xf32> to vector<8x2x128xf32>
    %9 = arith.addf %5, %8 : vector<8x2x128xf32>
    %c0_6 = arith.constant 0 : index
    %c0_7 = arith.constant 0 : index
    %c0_8 = arith.constant 0 : index
    %10 = vector.load %arg8[%c0_6, %c0_7, %c0_8] : memref<8x2x128xf32, #tpu.memory_space<vmem>>, vector<8x2x128xf32>
    tpu.vector_store %arg8[%c0_6, %c0_7, %c0_8], %9 {strides = array<i32>} : memref<8x2x128xf32, #tpu.memory_space<vmem>>, vector<8x2x128xf32>,
    %cst = arith.constant 0.000000e+00 : f32
    %11 = vector.broadcast %cst : f32 to vector<2x32xf32>
    %cst_9 = arith.constant 0.000000e+00 : f32
    %12 = vector.broadcast %cst_9 : f32 to vector<2x32xf32>
    %c0_i32 = arith.constant 0 : i32
    %c0_10 = arith.constant 0 : index
    %c0_11 = arith.constant 0 : index
    %13 = vector.load %arg3[%c0_10, %c0_11] : memref<32x128xf32, #tpu.memory_space<vmem>>, vector<32x128xf32>
    %cst_12 = arith.constant dense<0.000000e+00> : vector<2x128xf32>
    %14 = tpu.matmul %11, %13, %cst_12 {dimension_numbers = #tpu.dot_dimension_numbers<[1], [0], [0], [1], [0, 0, 1, 1], [], []>} : vector<2x32xf32>, vector<32x128xf32>, vector<2x128xf32> -> vector<2x128xf32>
    %15 = arith.index_cast %c0_i32 : i32 to index
    %c0_13 = arith.constant 0 : index
    %c0_14 = arith.constant 0 : index
    %16 = vector.load %arg8[%15, %c0_13, %c0_14] : memref<8x2x128xf32, #tpu.memory_space<vmem>>, vector<1x2x128xf32>
    %17 = vector.shape_cast %16 : vector<1x2x128xf32> to vector<2x128xf32>
    %18 = arith.addf %14, %17 : vector<2x128xf32>
    %19 = arith.negf %18 : vector<2x128xf32>
    %20 = math.exp %19 : vector<2x128xf32>
    %cst_15 = arith.constant 1.000000e+00 : f32
    %21 = vector.broadcast %cst_15 : f32 to vector<2x128xf32>
    %22 = arith.addf %21, %20 : vector<2x128xf32>
    %23 = arith.divf %21, %22 : vector<2x128xf32>
    %24 = vector.extract_strided_slice %18 {offsets = [0, 64], sizes = [2, 32], strides = [1, 1]} : vector<2x128xf32> to vector<2x32xf32>
    %25 = math.tanh %24 : vector<2x32xf32>
    %26 = vector.extract_strided_slice %23 {offsets = [0, 0], sizes = [2, 32], strides = [1, 1]} : vector<2x128xf32> to vector<2x32xf32>
    %27 = vector.extract_strided_slice %23 {offsets = [0, 32], sizes = [2, 32], strides = [1, 1]} : vector<2x128xf32> to vector<2x32xf32>
    %28 = vector.extract_strided_slice %23 {offsets = [0, 96], sizes = [2, 32], strides = [1, 1]} : vector<2x128xf32> to vector<2x32xf32>
    %29 = arith.mulf %27, %12 : vector<2x32xf32>
    %30 = arith.mulf %26, %25 : vector<2x32xf32>
    %31 = arith.addf %29, %30 : vector<2x32xf32>
    %32 = math.tanh %31 : vector<2x32xf32>
    %33 = arith.mulf %28, %32 : vector<2x32xf32>
    %c1_i32 = arith.constant 1 : i32
    %c0_16 = arith.constant 0 : index
    %c0_17 = arith.constant 0 : index
    %34 = vector.load %arg3[%c0_16, %c0_17] : memref<32x128xf32, #tpu.memory_space<vmem>>, vector<32x128xf32>
    %cst_18 = arith.constant dense<0.000000e+00> : vector<2x128xf32>
    %35 = tpu.matmul %33, %34, %cst_18 {dimension_numbers = #tpu.dot_dimension_numbers<[1], [0], [0], [1], [0, 0, 1, 1], [], []>} : vector<2x32xf32>, vector<32x128xf32>, vector<2x128xf32> -> vector<2x128xf32>
    %36 = arith.index_cast %c1_i32 : i32 to index
    %c0_19 = arith.constant 0 : index
    %c0_20 = arith.constant 0 : index
    %37 = vector.load %arg8[%36, %c0_19, %c0_20] : memref<8x2x128xf32, #tpu.memory_space<vmem>>, vector<1x2x128xf32>
    %38 = vector.shape_cast %37 : vector<1x2x128xf32> to vector<2x128xf32>
    %39 = arith.addf %35, %38 : vector<2x128xf32>
    %40 = arith.negf %39 : vector<2x128xf32>
    %41 = math.exp %40 : vector<2x128xf32>
    %cst_21 = arith.constant 1.000000e+00 : f32
    %42 = vector.broadcast %cst_21 : f32 to vector<2x128xf32>
    %43 = arith.addf %42, %41 : vector<2x128xf32>
    %44 = arith.divf %42, %43 : vector<2x128xf32>
    %45 = vector.extract_strided_slice %39 {offsets = [0, 64], sizes = [2, 32], strides = [1, 1]} : vector<2x128xf32> to vector<2x32xf32>
    %46 = math.tanh %45 : vector<2x32xf32>
    %47 = vector.extract_strided_slice %44 {offsets = [0, 0], sizes = [2, 32], strides = [1, 1]} : vector<2x128xf32> to vector<2x32xf32>
    %48 = vector.extract_strided_slice %44 {offsets = [0, 32], sizes = [2, 32], strides = [1, 1]} : vector<2x128xf32> to vector<2x32xf32>
    %49 = vector.extract_strided_slice %44 {offsets = [0, 96], sizes = [2, 32], strides = [1, 1]} : vector<2x128xf32> to vector<2x32xf32>
    %50 = arith.mulf %48, %31 : vector<2x32xf32>
    %51 = arith.mulf %47, %46 : vector<2x32xf32>
    %52 = arith.addf %50, %51 : vector<2x32xf32>
    %53 = math.tanh %52 : vector<2x32xf32>
    %54 = arith.mulf %49, %53 : vector<2x32xf32>
    %c2_i32 = arith.constant 2 : i32
    %c0_22 = arith.constant 0 : index
    %c0_23 = arith.constant 0 : index
    %55 = vector.load %arg3[%c0_22, %c0_23] : memref<32x128xf32, #tpu.memory_space<vmem>>, vector<32x128xf32>
    %cst_24 = arith.constant dense<0.000000e+00> : vector<2x128xf32>
    %56 = tpu.matmul %54, %55, %cst_24 {dimension_numbers = #tpu.dot_dimension_numbers<[1], [0], [0], [1], [0, 0, 1, 1], [], []>} : vector<2x32xf32>, vector<32x128xf32>, vector<2x128xf32> -> vector<2x128xf32>
    %57 = arith.index_cast %c2_i32 : i32 to index
    %c0_25 = arith.constant 0 : index
    %c0_26 = arith.constant 0 : index
    %58 = vector.load %arg8[%57, %c0_25, %c0_26] : memref<8x2x128xf32, #tpu.memory_space<vmem>>, vector<1x2x128xf32>
    %59 = vector.shape_cast %58 : vector<1x2x128xf32> to vector<2x128xf32>
    %60 = arith.addf %56, %59 : vector<2x128xf32>
    %61 = arith.negf %60 : vector<2x128xf32>
    %62 = math.exp %61 : vector<2x128xf32>
    %cst_27 = arith.constant 1.000000e+00 : f32
    %63 = vector.broadcast %cst_27 : f32 to vector<2x128xf32>
    %64 = arith.addf %63, %62 : vector<2x128xf32>
    %65 = arith.divf %63, %64 : vector<2x128xf32>
    %66 = vector.extract_strided_slice %60 {offsets = [0, 64], sizes = [2, 32], strides = [1, 1]} : vector<2x128xf32> to vector<2x32xf32>
    %67 = math.tanh %66 : vector<2x32xf32>
    %68 = vector.extract_strided_slice %65 {offsets = [0, 0], sizes = [2, 32], strides = [1, 1]} : vector<2x128xf32> to vector<2x32xf32>
    %69 = vector.extract_strided_slice %65 {offsets = [0, 32], sizes = [2, 32], strides = [1, 1]} : vector<2x128xf32> to vector<2x32xf32>
    %70 = vector.extract_strided_slice %65 {offsets = [0, 96], sizes = [2, 32], strides = [1, 1]} : vector<2x128xf32> to vector<2x32xf32>
    %71 = arith.mulf %69, %52 : vector<2x32xf32>
    %72 = arith.mulf %68, %67 : vector<2x32xf32>
    %73 = arith.addf %71, %72 : vector<2x32xf32>
    %74 = math.tanh %73 : vector<2x32xf32>
    %75 = arith.mulf %70, %74 : vector<2x32xf32>
    %c3_i32 = arith.constant 3 : i32
    %c0_28 = arith.constant 0 : index
    %c0_29 = arith.constant 0 : index
    %76 = vector.load %arg3[%c0_28, %c0_29] : memref<32x128xf32, #tpu.memory_space<vmem>>, vector<32x128xf32>
    %cst_30 = arith.constant dense<0.000000e+00> : vector<2x128xf32>
    %77 = tpu.matmul %75, %76, %cst_30 {dimension_numbers = #tpu.dot_dimension_numbers<[1], [0], [0], [1], [0, 0, 1, 1], [], []>} : vector<2x32xf32>, vector<32x128xf32>, vector<2x128xf32> -> vector<2x128xf32>
    %78 = arith.index_cast %c3_i32 : i32 to index
    %c0_31 = arith.constant 0 : index
    %c0_32 = arith.constant 0 : index
    %79 = vector.load %arg8[%78, %c0_31, %c0_32] : memref<8x2x128xf32, #tpu.memory_space<vmem>>, vector<1x2x128xf32>
    %80 = vector.shape_cast %79 : vector<1x2x128xf32> to vector<2x128xf32>
    %81 = arith.addf %77, %80 : vector<2x128xf32>
    %82 = arith.negf %81 : vector<2x128xf32>
    %83 = math.exp %82 : vector<2x128xf32>
    %cst_33 = arith.constant 1.000000e+00 : f32
    %84 = vector.broadcast %cst_33 : f32 to vector<2x128xf32>
    %85 = arith.addf %84, %83 : vector<2x128xf32>
    %86 = arith.divf %84, %85 : vector<2x128xf32>
    %87 = vector.extract_strided_slice %81 {offsets = [0, 64], sizes = [2, 32], strides = [1, 1]} : vector<2x128xf32> to vector<2x32xf32>
    %88 = math.tanh %87 : vector<2x32xf32>
    %89 = vector.extract_strided_slice %86 {offsets = [0, 0], sizes = [2, 32], strides = [1, 1]} : vector<2x128xf32> to vector<2x32xf32>
    %90 = vector.extract_strided_slice %86 {offsets = [0, 32], sizes = [2, 32], strides = [1, 1]} : vector<2x128xf32> to vector<2x32xf32>
    %91 = vector.extract_strided_slice %86 {offsets = [0, 96], sizes = [2, 32], strides = [1, 1]} : vector<2x128xf32> to vector<2x32xf32>
    %92 = arith.mulf %90, %73 : vector<2x32xf32>
    %93 = arith.mulf %89, %88 : vector<2x32xf32>
    %94 = arith.addf %92, %93 : vector<2x32xf32>
    %95 = math.tanh %94 : vector<2x32xf32>
    %96 = arith.mulf %91, %95 : vector<2x32xf32>
    %c4_i32 = arith.constant 4 : i32
    %c0_34 = arith.constant 0 : index
    %c0_35 = arith.constant 0 : index
    %97 = vector.load %arg3[%c0_34, %c0_35] : memref<32x128xf32, #tpu.memory_space<vmem>>, vector<32x128xf32>
    %cst_36 = arith.constant dense<0.000000e+00> : vector<2x128xf32>
    %98 = tpu.matmul %96, %97, %cst_36 {dimension_numbers = #tpu.dot_dimension_numbers<[1], [0], [0], [1], [0, 0, 1, 1], [], []>} : vector<2x32xf32>, vector<32x128xf32>, vector<2x128xf32> -> vector<2x128xf32>
    %99 = arith.index_cast %c4_i32 : i32 to index
    %c0_37 = arith.constant 0 : index
    %c0_38 = arith.constant 0 : index
    %100 = vector.load %arg8[%99, %c0_37, %c0_38] : memref<8x2x128xf32, #tpu.memory_space<vmem>>, vector<1x2x128xf32>
    %101 = vector.shape_cast %100 : vector<1x2x128xf32> to vector<2x128xf32>
    %102 = arith.addf %98, %101 : vector<2x128xf32>
    %103 = arith.negf %102 : vector<2x128xf32>
    %104 = math.exp %103 : vector<2x128xf32>
    %cst_39 = arith.constant 1.000000e+00 : f32
    %105 = vector.broadcast %cst_39 : f32 to vector<2x128xf32>
    %106 = arith.addf %105, %104 : vector<2x128xf32>
    %107 = arith.divf %105, %106 : vector<2x128xf32>
    %108 = vector.extract_strided_slice %102 {offsets = [0, 64], sizes = [2, 32], strides = [1, 1]} : vector<2x128xf32> to vector<2x32xf32>
    %109 = math.tanh %108 : vector<2x32xf32>
    %110 = vector.extract_strided_slice %107 {offsets = [0, 0], sizes = [2, 32], strides = [1, 1]} : vector<2x128xf32> to vector<2x32xf32>
    %111 = vector.extract_strided_slice %107 {offsets = [0, 32], sizes = [2, 32], strides = [1, 1]} : vector<2x128xf32> to vector<2x32xf32>
    %112 = vector.extract_strided_slice %107 {offsets = [0, 96], sizes = [2, 32], strides = [1, 1]} : vector<2x128xf32> to vector<2x32xf32>
    %113 = arith.mulf %111, %94 : vector<2x32xf32>
    %114 = arith.mulf %110, %109 : vector<2x32xf32>
    %115 = arith.addf %113, %114 : vector<2x32xf32>
    %116 = math.tanh %115 : vector<2x32xf32>
    %117 = arith.mulf %112, %116 : vector<2x32xf32>
    %c5_i32 = arith.constant 5 : i32
    %c0_40 = arith.constant 0 : index
    %c0_41 = arith.constant 0 : index
    %118 = vector.load %arg3[%c0_40, %c0_41] : memref<32x128xf32, #tpu.memory_space<vmem>>, vector<32x128xf32>
    %cst_42 = arith.constant dense<0.000000e+00> : vector<2x128xf32>
    %119 = tpu.matmul %117, %118, %cst_42 {dimension_numbers = #tpu.dot_dimension_numbers<[1], [0], [0], [1], [0, 0, 1, 1], [], []>} : vector<2x32xf32>, vector<32x128xf32>, vector<2x128xf32> -> vector<2x128xf32>
    %120 = arith.index_cast %c5_i32 : i32 to index
    %c0_43 = arith.constant 0 : index
    %c0_44 = arith.constant 0 : index
    %121 = vector.load %arg8[%120, %c0_43, %c0_44] : memref<8x2x128xf32, #tpu.memory_space<vmem>>, vector<1x2x128xf32>
    %122 = vector.shape_cast %121 : vector<1x2x128xf32> to vector<2x128xf32>
    %123 = arith.addf %119, %122 : vector<2x128xf32>
    %124 = arith.negf %123 : vector<2x128xf32>
    %125 = math.exp %124 : vector<2x128xf32>
    %cst_45 = arith.constant 1.000000e+00 : f32
    %126 = vector.broadcast %cst_45 : f32 to vector<2x128xf32>
    %127 = arith.addf %126, %125 : vector<2x128xf32>
    %128 = arith.divf %126, %127 : vector<2x128xf32>
    %129 = vector.extract_strided_slice %123 {offsets = [0, 64], sizes = [2, 32], strides = [1, 1]} : vector<2x128xf32> to vector<2x32xf32>
    %130 = math.tanh %129 : vector<2x32xf32>
    %131 = vector.extract_strided_slice %128 {offsets = [0, 0], sizes = [2, 32], strides = [1, 1]} : vector<2x128xf32> to vector<2x32xf32>
    %132 = vector.extract_strided_slice %128 {offsets = [0, 32], sizes = [2, 32], strides = [1, 1]} : vector<2x128xf32> to vector<2x32xf32>
    %133 = vector.extract_strided_slice %128 {offsets = [0, 96], sizes = [2, 32], strides = [1, 1]} : vector<2x128xf32> to vector<2x32xf32>
    %134 = arith.mulf %132, %115 : vector<2x32xf32>
    %135 = arith.mulf %131, %130 : vector<2x32xf32>
    %136 = arith.addf %134, %135 : vector<2x32xf32>
    %137 = math.tanh %136 : vector<2x32xf32>
    %138 = arith.mulf %133, %137 : vector<2x32xf32>
    %c6_i32 = arith.constant 6 : i32
    %c0_46 = arith.constant 0 : index
    %c0_47 = arith.constant 0 : index
    %139 = vector.load %arg3[%c0_46, %c0_47] : memref<32x128xf32, #tpu.memory_space<vmem>>, vector<32x128xf32>
    %cst_48 = arith.constant dense<0.000000e+00> : vector<2x128xf32>
    %140 = tpu.matmul %138, %139, %cst_48 {dimension_numbers = #tpu.dot_dimension_numbers<[1], [0], [0], [1], [0, 0, 1, 1], [], []>} : vector<2x32xf32>, vector<32x128xf32>, vector<2x128xf32> -> vector<2x128xf32>
    %141 = arith.index_cast %c6_i32 : i32 to index
    %c0_49 = arith.constant 0 : index
    %c0_50 = arith.constant 0 : index
    %142 = vector.load %arg8[%141, %c0_49, %c0_50] : memref<8x2x128xf32, #tpu.memory_space<vmem>>, vector<1x2x128xf32>
    %143 = vector.shape_cast %142 : vector<1x2x128xf32> to vector<2x128xf32>
    %144 = arith.addf %140, %143 : vector<2x128xf32>
    %145 = arith.negf %144 : vector<2x128xf32>
    %146 = math.exp %145 : vector<2x128xf32>
    %cst_51 = arith.constant 1.000000e+00 : f32
    %147 = vector.broadcast %cst_51 : f32 to vector<2x128xf32>
    %148 = arith.addf %147, %146 : vector<2x128xf32>
    %149 = arith.divf %147, %148 : vector<2x128xf32>
    %150 = vector.extract_strided_slice %144 {offsets = [0, 64], sizes = [2, 32], strides = [1, 1]} : vector<2x128xf32> to vector<2x32xf32>
    %151 = math.tanh %150 : vector<2x32xf32>
    %152 = vector.extract_strided_slice %149 {offsets = [0, 0], sizes = [2, 32], strides = [1, 1]} : vector<2x128xf32> to vector<2x32xf32>
    %153 = vector.extract_strided_slice %149 {offsets = [0, 32], sizes = [2, 32], strides = [1, 1]} : vector<2x128xf32> to vector<2x32xf32>
    %154 = vector.extract_strided_slice %149 {offsets = [0, 96], sizes = [2, 32], strides = [1, 1]} : vector<2x128xf32> to vector<2x32xf32>
    %155 = arith.mulf %153, %136 : vector<2x32xf32>
    %156 = arith.mulf %152, %151 : vector<2x32xf32>
    %157 = arith.addf %155, %156 : vector<2x32xf32>
    %158 = math.tanh %157 : vector<2x32xf32>
    %159 = arith.mulf %154, %158 : vector<2x32xf32>
    %c7_i32 = arith.constant 7 : i32
    %c0_52 = arith.constant 0 : index
    %c0_53 = arith.constant 0 : index
    %160 = vector.load %arg3[%c0_52, %c0_53] : memref<32x128xf32, #tpu.memory_space<vmem>>, vector<32x128xf32>
    %cst_54 = arith.constant dense<0.000000e+00> : vector<2x128xf32>
    %161 = tpu.matmul %159, %160, %cst_54 {dimension_numbers = #tpu.dot_dimension_numbers<[1], [0], [0], [1], [0, 0, 1, 1], [], []>} : vector<2x32xf32>, vector<32x128xf32>, vector<2x128xf32> -> vector<2x128xf32>
    %162 = arith.index_cast %c7_i32 : i32 to index
    %c0_55 = arith.constant 0 : index
    %c0_56 = arith.constant 0 : index
    %163 = vector.load %arg8[%162, %c0_55, %c0_56] : memref<8x2x128xf32, #tpu.memory_space<vmem>>, vector<1x2x128xf32>
    %164 = vector.shape_cast %163 : vector<1x2x128xf32> to vector<2x128xf32>
    %165 = arith.addf %161, %164 : vector<2x128xf32>
    %166 = arith.negf %165 : vector<2x128xf32>
    %167 = math.exp %166 : vector<2x128xf32>
    %cst_57 = arith.constant 1.000000e+00 : f32
    %168 = vector.broadcast %cst_57 : f32 to vector<2x128xf32>
    %169 = arith.addf %168, %167 : vector<2x128xf32>
    %170 = arith.divf %168, %169 : vector<2x128xf32>
    %171 = vector.extract_strided_slice %165 {offsets = [0, 64], sizes = [2, 32], strides = [1, 1]} : vector<2x128xf32> to vector<2x32xf32>
    %172 = math.tanh %171 : vector<2x32xf32>
    %173 = vector.extract_strided_slice %170 {offsets = [0, 0], sizes = [2, 32], strides = [1, 1]} : vector<2x128xf32> to vector<2x32xf32>
    %174 = vector.extract_strided_slice %170 {offsets = [0, 32], sizes = [2, 32], strides = [1, 1]} : vector<2x128xf32> to vector<2x32xf32>
    %175 = vector.extract_strided_slice %170 {offsets = [0, 96], sizes = [2, 32], strides = [1, 1]} : vector<2x128xf32> to vector<2x32xf32>
    %176 = arith.mulf %174, %157 : vector<2x32xf32>
    %177 = arith.mulf %173, %172 : vector<2x32xf32>
    %178 = arith.addf %176, %177 : vector<2x32xf32>
    %179 = math.tanh %178 : vector<2x32xf32>
    %180 = arith.mulf %175, %179 : vector<2x32xf32>
    %c8_i32 = arith.constant 8 : i32
    %c0_58 = arith.constant 0 : index
    %c0_59 = arith.constant 0 : index
    %181 = vector.load %arg5[%c0_58, %c0_59] : memref<32x1xf32, #tpu.memory_space<vmem>>, vector<32x1xf32>
    %cst_60 = arith.constant dense<0.000000e+00> : vector<2x1xf32>
    %182 = tpu.matmul %180, %181, %cst_60 {dimension_numbers = #tpu.dot_dimension_numbers<[1], [0], [0], [1], [0, 0, 1, 1], [], []>} : vector<2x32xf32>, vector<32x1xf32>, vector<2x1xf32> -> vector<2x1xf32>
    %c0_61 = arith.constant 0 : index
    %c0_62 = arith.constant 0 : index
    %183 = vector.load %arg6[%c0_61, %c0_62] : memref<1x1xf32, #tpu.memory_space<vmem>>, vector<1x1xf32>
    %184 = vector.broadcast %183 : vector<1x1xf32> to vector<2x1xf32>
    %185 = arith.addf %182, %184 : vector<2x1xf32>
    %c0_63 = arith.constant 0 : index
    %c0_64 = arith.constant 0 : index
    %186 = vector.load %arg7[%c0_63, %c0_64] : memref<2x1xf32, #tpu.memory_space<vmem>>, vector<2x1xf32>
    tpu.vector_store %arg7[%c0_63, %c0_64], %185 {strides = array<i32>} : memref<2x1xf32, #tpu.memory_space<vmem>>, vector<2x1xf32>,
    return
  }
  func.func @transform_0(%arg0: i32) -> (i32, i32, i32) {
    %c0_i32 = arith.constant 0 : i32
    %c0_i32_0 = arith.constant 0 : i32
    %c0_i32_1 = arith.constant 0 : i32
    return %c0_i32, %arg0, %c0_i32_0 : i32, i32, i32
  }
  func.func @transform_1(%arg0: i32) -> (i32, i32) {
    %c0_i32 = arith.constant 0 : i32
    %c0_i32_0 = arith.constant 0 : i32
    %c0_i32_1 = arith.constant 0 : i32
    return %c0_i32, %c0_i32_0 : i32, i32
  }
  func.func @transform_2(%arg0: i32) -> (i32, i32) {
    %c0_i32 = arith.constant 0 : i32
    %c0_i32_0 = arith.constant 0 : i32
    %c0_i32_1 = arith.constant 0 : i32
    return %c0_i32, %c0_i32_0 : i32, i32
  }
  func.func @transform_3(%arg0: i32) -> (i32, i32) {
    %c0_i32 = arith.constant 0 : i32
    %c0_i32_0 = arith.constant 0 : i32
    %c0_i32_1 = arith.constant 0 : i32
    return %c0_i32, %c0_i32_0 : i32, i32
  }
  func.func @transform_4(%arg0: i32) -> (i32, i32) {
    %c0_i32 = arith.constant 0 : i32
    %c0_i32_0 = arith.constant 0 : i32
    %c0_i32_1 = arith.constant 0 : i32
    return %c0_i32, %c0_i32_0 : i32, i32
  }
  func.func @transform_5(%arg0: i32) -> (i32, i32) {
    %c0_i32 = arith.constant 0 : i32
    %c0_i32_0 = arith.constant 0 : i32
    %c0_i32_1 = arith.constant 0 : i32
    return %c0_i32, %c0_i32_0 : i32, i32
  }
  func.func @transform_6(%arg0: i32) -> (i32, i32) {
    %c0_i32 = arith.constant 0 : i32
    %c0_i32_0 = arith.constant 0 : i32
    return %arg0, %c0_i32 : i32, i32
  }
}

</mosaic_0001>

<llo_original>
// kernel: tpu_custom_call.1
$region0: #{tpu_custom_call.1}
  #allocation0 [shape = 'u32[]', space=smem, size = 0x4, offset = 0x4, fixed_abs, tag = 'smem constant byte address 0x4 - core index']
  #allocation1 [shape = 'u32[144,128]{1,0:T(1,128)}', space=vmem, size = 0x12000, scoped, tag = 'internal scratch']
  #allocation2 [shape = 'f32[8,2,128]{2,1,0:T(2,128)}', space=vmem, size = 0x2000, scoped, tag = 'scratch operand']
  #allocation3 [shape = 'f32[1,1]{1,0:T(1,128)S(1)}', space=vmem, size = 0x200, scoped, tag = 'scoped memory for tpu_custom_call.1']
  %s0 = inlined_call_operand.vmem [shape: f32[8,2,1], index: 0, kind: input, shape index: {}]
  %s1 = inlined_call_operand.vmem [shape: f32[1,128], index: 1, kind: input, shape index: {}]
  %s2 = inlined_call_operand.vmem [shape: f32[32,128], index: 2, kind: input, shape index: {}]
  %s3 = inlined_call_operand.vmem [shape: f32[1,128], index: 3, kind: input, shape index: {}]
  %s4 = inlined_call_operand.vmem [shape: f32[32,1], index: 4, kind: input, shape index: {}]
  %s5 = inlined_call_operand.<no memory space> [shape: f32[1,1], index: 5, kind: input, shape index: {}]
  %s6 = inlined_call_operand.vmem [shape: f32[2,1], index: 6, kind: output, shape index: {}]
  %s7 = sld [smem:[#allocation0]]
  $region34: #{tpu_custom_call.1} parent=0
    _
  %s9 = ssub.s32 1, %s7
  %s10 = scalar_select 0, %s9, %s7
  %v11 = vstv %s5
  %12 = vst [vmem:[#allocation3] sm:$0x1] %v11
  // Predicated region
  $region2: #{tpu_custom_call.1} parent=0 // pred_check
    _
  $region3: #{tpu_custom_call.1} parent=0 // pred_check_branch
    %14 = sbr.rel (0) target = $region5
  $region4: #{tpu_custom_call.1} parent=0 // pred_region
    _
  $region5: #{tpu_custom_call.1} parent=0 // pred_fallthru
    _
  // Predicated region
  $region6: #{tpu_custom_call.1} parent=0 // pred_check
    _
  $region7: #{tpu_custom_call.1} parent=0 // pred_check_branch
    %16 = sbr.rel (0) target = $region9
  $region8: #{tpu_custom_call.1} parent=0 // pred_region
    _
  $region9: #{tpu_custom_call.1} parent=0 // pred_fallthru
    _
  // Predicated region
  $region10: #{tpu_custom_call.1} parent=0 // pred_check
    _
  $region11: #{tpu_custom_call.1} parent=0 // pred_check_branch
    %18 = sbr.rel (0) target = $region13
  $region12: #{tpu_custom_call.1} parent=0 // pred_region
    _
  $region13: #{tpu_custom_call.1} parent=0 // pred_fallthru
    _
  // Predicated region
  $region14: #{tpu_custom_call.1} parent=0 // pred_check
    _
  $region15: #{tpu_custom_call.1} parent=0 // pred_check_branch
    %20 = sbr.rel (0) target = $region17
  $region16: #{tpu_custom_call.1} parent=0 // pred_region
    _
  $region17: #{tpu_custom_call.1} parent=0 // pred_fallthru
    _
  // Predicated region
  $region18: #{tpu_custom_call.1} parent=0 // pred_check
    _
  $region19: #{tpu_custom_call.1} parent=0 // pred_check_branch
    %22 = sbr.rel (0) target = $region21
  $region20: #{tpu_custom_call.1} parent=0 // pred_region
    _
  $region21: #{tpu_custom_call.1} parent=0 // pred_fallthru
    _
  // Predicated region
  $region22: #{tpu_custom_call.1} parent=0 // pred_check
    _
  $region23: #{tpu_custom_call.1} parent=0 // pred_check_branch
    %24 = sbr.rel (0) target = $region25
  $region24: #{tpu_custom_call.1} parent=0 // pred_region
    _
  $region25: #{tpu_custom_call.1} parent=0 // pred_fallthru
    _
  %v25 = vld [vmem:[%s0] sm:$0x3]
  %v26 = vld [vmem:[%s0 + $0x2] sm:$0x3]
  %v27 = vld [vmem:[%s0 + $0x4] sm:$0x3]
  %v28 = vld [vmem:[%s0 + $0x6] sm:$0x3]
  %v29 = vld [vmem:[%s0 + $0x8] sm:$0x3]
  %v30 = vld [vmem:[%s0 + $0xa] sm:$0x3]
  %v31 = vld [vmem:[%s0 + $0xc] sm:$0x3]
  %v32 = vld [vmem:[%s0 + $0xe] sm:$0x3]
  %v33 = vld [vmem:[%s1] sm:$0x1]
  %35 = vset.pattern.permute.xlu0 0
  %36 = vperm.xlu0 %35, %v25
  %v37 = vpop.permute.xlu0 %36
  %40 = vset.pattern.permute.xlu0 0
  %41 = vperm.xlu0 %40, %v26
  %v42 = vpop.permute.xlu0 %41
  %45 = vset.pattern.permute.xlu0 0
  %46 = vperm.xlu0 %45, %v27
  %v47 = vpop.permute.xlu0 %46
  %50 = vset.pattern.permute.xlu0 0
  %51 = vperm.xlu0 %50, %v28
  %v52 = vpop.permute.xlu0 %51
  %55 = vset.pattern.permute.xlu0 0
  %56 = vperm.xlu0 %55, %v29
  %v57 = vpop.permute.xlu0 %56
  %60 = vset.pattern.permute.xlu0 0
  %61 = vperm.xlu0 %60, %v30
  %v62 = vpop.permute.xlu0 %61
  %65 = vset.pattern.permute.xlu0 0
  %66 = vperm.xlu0 %65, %v31
  %v67 = vpop.permute.xlu0 %66
  %70 = vset.pattern.permute.xlu0 0
  %71 = vperm.xlu0 %70, %v32
  %v72 = vpop.permute.xlu0 %71
  %v75 = vlaneseq
  %v76 = vshrl.u32 %v75, 7
  %v77 = vsub.s32 0, %v76
  %v78 = vrot.slane %v33, %v77
  %v80 = vmul.f32 %v37, %v78
  %v81 = vmul.f32 %v42, %v78
  %v82 = vmul.f32 %v47, %v78
  %v83 = vmul.f32 %v52, %v78
  %v84 = vmul.f32 %v57, %v78
  %v85 = vmul.f32 %v62, %v78
  %v86 = vmul.f32 %v67, %v78
  %v87 = vmul.f32 %v72, %v78
  %v88 = vld [vmem:[%s3] sm:$0x1]
  %v90 = vlaneseq
  %v91 = vshrl.u32 %v90, 7
  %v92 = vsub.s32 0, %v91
  %v93 = vrot.slane %v88, %v92
  %v95 = vadd.f32 %v80, %v93
  %v96 = vadd.f32 %v81, %v93
  %v97 = vadd.f32 %v82, %v93
  %v98 = vadd.f32 %v83, %v93
  %v99 = vadd.f32 %v84, %v93
  %v100 = vadd.f32 %v85, %v93
  %v101 = vadd.f32 %v86, %v93
  %v102 = vadd.f32 %v87, %v93
  %103 = vst [vmem:[#allocation2] sm:$0x3] %v95
  %104 = vst [vmem:[#allocation2 + $0x2] sm:$0x3] %v96
  %105 = vst [vmem:[#allocation2 + $0x4] sm:$0x3] %v97
  %106 = vst [vmem:[#allocation2 + $0x6] sm:$0x3] %v98
  %107 = vst [vmem:[#allocation2 + $0x8] sm:$0x3] %v99
  %108 = vst [vmem:[#allocation2 + $0xa] sm:$0x3] %v100
  %109 = vst [vmem:[#allocation2 + $0xc] sm:$0x3] %v101
  %110 = vst [vmem:[#allocation2 + $0xe] sm:$0x3] %v102
  %v111 = vld [vmem:[%s2] sm:$0xff]
  %v112 = vld [vmem:[%s2 + $0x8] sm:$0xff]
  %v113 = vld [vmem:[%s2 + $0x10] sm:$0xff]
  %v114 = vld [vmem:[%s2 + $0x18] sm:$0xff]
  %v115 = vld [vmem:[#allocation2] sm:$0x3]
  %vm116 = vcmask 261120
  %v118 = vsel %vm116, 0.0, 0
  %120 = vmatprep.subr.mxu0 0.0
  %121 = vmatpush1.msra.mxu0 0.0
  %122 = vmatprep.subr.mxu0 0.0
  %123 = vmatpush1.msra.mxu0 0.0
  %124 = vmatprep.subr.mxu0 0.0
  %125 = vmatpush1.msra.mxu0 0.0
  %126 = vmatprep.subr.mxu0 0.0
  %127 = vmatpush1.msra.mxu0 0.0
  %128 = vmatprep.subr.mxu0 0.0
  %129 = vmatpush1.msra.mxu0 0.0
  %130 = vmatprep.subr.mxu0 0.0
  %131 = vmatpush1.msra.mxu0 0.0
  %132 = vmatprep.subr.mxu0 0.0
  %133 = vmatpush1.msra.mxu0 0.0
  %134 = vmatprep.subr.mxu0 0.0
  %135 = vmatpush1.msra.mxu0 0.0
  %136 = vmatprep.subr.mxu0 0.0
  %137 = vmatpush1.msra.mxu0 0.0
  %138 = vmatprep.subr.mxu0 0.0
  %139 = vmatpush1.msra.mxu0 0.0
  %140 = vmatprep.subr.mxu0 0.0
  %141 = vmatpush1.msra.mxu0 0.0
  %142 = vmatprep.subr.mxu0 0.0
  %143 = vmatpush1.msra.mxu0 0.0
  %144 = vmatprep.subr.mxu0 0.0
  %145 = vmatpush1.msra.mxu0 %v114
  %146 = vmatprep.subr.mxu0 0.0
  %147 = vmatpush1.msra.mxu0 %v113
  %148 = vmatprep.subr.mxu0 0.0
  %149 = vmatpush1.msra.mxu0 %v112
  %150 = vmatprep.subr.mxu0 0.0
  %151 = vmatpush1.msra.mxu0 %v111
  %152 = vmatprep.subr.mxu0 0.0
  %153 = vmatpush2.msra.mxu0 0.0
  %154 = vmatprep.subr.mxu0 0.0
  %155 = vmatpush2.msra.mxu0 0.0
  %156 = vmatprep.subr.mxu0 0.0
  %157 = vmatpush2.msra.mxu0 0.0
  %158 = vmatprep.subr.mxu0 0.0
  %159 = vmatpush2.msra.mxu0 0.0
  %160 = vmatprep.subr.mxu0 0.0
  %161 = vmatpush2.msra.mxu0 0.0
  %162 = vmatprep.subr.mxu0 0.0
  %163 = vmatpush2.msra.mxu0 0.0
  %164 = vmatprep.subr.mxu0 0.0
  %165 = vmatpush2.msra.mxu0 0.0
  %166 = vmatprep.subr.mxu0 0.0
  %167 = vmatpush2.msra.mxu0 0.0
  %168 = vmatprep.subr.mxu0 0.0
  %169 = vmatpush2.msra.mxu0 0.0
  %170 = vmatprep.subr.mxu0 0.0
  %171 = vmatpush2.msra.mxu0 0.0
  %172 = vmatprep.subr.mxu0 0.0
  %173 = vmatpush2.msra.mxu0 0.0
  %174 = vmatprep.subr.mxu0 0.0
  %175 = vmatpush2.msra.mxu0 0.0
  %176 = vmatprep.subr.mxu0 0.0
  %177 = vmatpush2.msra.mxu0 0.0
  %178 = vmatprep.subr.mxu0 0.0
  %179 = vmatpush2.msra.mxu0 0.0
  %180 = vmatprep.subr.mxu0 0.0
  %181 = vmatpush2.msra.mxu0 0.0
  %182 = vmatprep.subr.mxu0 0.0
  %183 = vmatpush2.msra.mxu0 0.0
  %184 = vmatprep.mubr.f32.mxu0 0.0
  %185 = vmatmul.mubr.f32.gmra.mxu0 %v118
  %v186 = vpop.f32.mrf.mxu0
  %v187 = vadd.f32 %v115, %v186
  %v188 = vpop.f32.mrf.mxu0
  %189 = vdwg.mxu0
  %v190 = vxor.u32 %v187, 2147483648
  %v191 = vmul.f32 %v190, 1.442695
  %v192 = vpow.pop %v191
  %v193 = vadd.f32 %v192, 1.0
  %v194 = vrcp.pop %v193
  %v195 = vmul.f32 1.0, %v194
  %v196 = vtanh.pop %v187
  %v197 = vmul.f32 %v195, 0.0
  %199 = vrot.lane.b32.xlu0 %v196, 64
  %v200 = vpop.permute.xlu0 %199
  %v202 = vmul.f32 %v195, %v200
  %204 = vrot.lane.b32.xlu0 %v202, 32
  %v205 = vpop.permute.xlu0 %204
  %v207 = vadd.f32 %v197, %v205
  %v208 = vtanh.pop %v207
  %210 = vrot.lane.b32.xlu0 %v208, 64
  %v211 = vpop.permute.xlu0 %210
  %v213 = vmul.f32 %v195, %v211
  %s214 = scalar_lea.vmem [#allocation2], 2
  %v215 = vld [vmem:[%s214] sm:$0x3]
  %217 = vrot.lane.b32.xlu0 %v213, 32
  %v218 = vpop.permute.xlu0 %217
  %v219 = vsel %vm116, %v218, 0
  %221 = vmatprep.subr.mxu0 0.0
  %222 = vmatpush1.msra.mxu0 0.0
  %223 = vmatprep.subr.mxu0 0.0
  %224 = vmatpush1.msra.mxu0 0.0
  %225 = vmatprep.subr.mxu0 0.0
  %226 = vmatpush1.msra.mxu0 0.0
  %227 = vmatprep.subr.mxu0 0.0
  %228 = vmatpush1.msra.mxu0 0.0
  %229 = vmatprep.subr.mxu0 0.0
  %230 = vmatpush1.msra.mxu0 0.0
  %231 = vmatprep.subr.mxu0 0.0
  %232 = vmatpush1.msra.mxu0 0.0
  %233 = vmatprep.subr.mxu0 0.0
  %234 = vmatpush1.msra.mxu0 0.0
  %235 = vmatprep.subr.mxu0 0.0
  %236 = vmatpush1.msra.mxu0 0.0
  %237 = vmatprep.subr.mxu0 0.0
  %238 = vmatpush1.msra.mxu0 0.0
  %239 = vmatprep.subr.mxu0 0.0
  %240 = vmatpush1.msra.mxu0 0.0
  %241 = vmatprep.subr.mxu0 0.0
  %242 = vmatpush1.msra.mxu0 0.0
  %243 = vmatprep.subr.mxu0 0.0
  %244 = vmatpush1.msra.mxu0 0.0
  %245 = vmatprep.subr.mxu0 0.0
  %246 = vmatpush1.msra.mxu0 %v114
  %247 = vmatprep.subr.mxu0 0.0
  %248 = vmatpush1.msra.mxu0 %v113
  %249 = vmatprep.subr.mxu0 0.0
  %250 = vmatpush1.msra.mxu0 %v112
  %251 = vmatprep.subr.mxu0 0.0
  %252 = vmatpush1.msra.mxu0 %v111
  %253 = vmatprep.subr.mxu0 0.0
  %254 = vmatpush2.msra.mxu0 0.0
  %255 = vmatprep.subr.mxu0 0.0
  %256 = vmatpush2.msra.mxu0 0.0
  %257 = vmatprep.subr.mxu0 0.0
  %258 = vmatpush2.msra.mxu0 0.0
  %259 = vmatprep.subr.mxu0 0.0
  %260 = vmatpush2.msra.mxu0 0.0
  %261 = vmatprep.subr.mxu0 0.0
  %262 = vmatpush2.msra.mxu0 0.0
  %263 = vmatprep.subr.mxu0 0.0
  %264 = vmatpush2.msra.mxu0 0.0
  %265 = vmatprep.subr.mxu0 0.0
  %266 = vmatpush2.msra.mxu0 0.0
  %267 = vmatprep.subr.mxu0 0.0
  %268 = vmatpush2.msra.mxu0 0.0
  %269 = vmatprep.subr.mxu0 0.0
  %270 = vmatpush2.msra.mxu0 0.0
  %271 = vmatprep.subr.mxu0 0.0
  %272 = vmatpush2.msra.mxu0 0.0
  %273 = vmatprep.subr.mxu0 0.0
  %274 = vmatpush2.msra.mxu0 0.0
  %275 = vmatprep.subr.mxu0 0.0
  %276 = vmatpush2.msra.mxu0 0.0
  %277 = vmatprep.subr.mxu0 0.0
  %278 = vmatpush2.msra.mxu0 0.0
  %279 = vmatprep.subr.mxu0 0.0
  %280 = vmatpush2.msra.mxu0 0.0
  %281 = vmatprep.subr.mxu0 0.0
  %282 = vmatpush2.msra.mxu0 0.0
  %283 = vmatprep.subr.mxu0 0.0
  %284 = vmatpush2.msra.mxu0 0.0
  %285 = vmatprep.mubr.f32.mxu0 0.0
  %286 = vmatmul.mubr.f32.gmra.mxu0 %v219
  %v287 = vpop.f32.mrf.mxu0
  %v288 = vadd.f32 %v215, %v287
  %v289 = vpop.f32.mrf.mxu0
  %290 = vdwg.mxu0
  %v291 = vxor.u32 %v288, 2147483648
  %v292 = vmul.f32 %v291, 1.442695
  %v293 = vpow.pop %v292
  %v294 = vadd.f32 %v293, 1.0
  %v295 = vrcp.pop %v294
  %v296 = vmul.f32 1.0, %v295
  %v297 = vtanh.pop %v288
  %v298 = vmul.f32 %v296, %v207
  %300 = vrot.lane.b32.xlu0 %v297, 64
  %v301 = vpop.permute.xlu0 %300
  %v303 = vmul.f32 %v296, %v301
  %305 = vrot.lane.b32.xlu0 %v303, 32
  %v306 = vpop.permute.xlu0 %305
  %v308 = vadd.f32 %v298, %v306
  %v309 = vtanh.pop %v308
  %311 = vrot.lane.b32.xlu0 %v309, 64
  %v312 = vpop.permute.xlu0 %311
  %v314 = vmul.f32 %v296, %v312
  %s315 = scalar_lea.vmem [#allocation2], 4
  %v316 = vld [vmem:[%s315] sm:$0x3]
  %318 = vrot.lane.b32.xlu0 %v314, 32
  %v319 = vpop.permute.xlu0 %318
  %v320 = vsel %vm116, %v319, 0
  %322 = vmatprep.subr.mxu0 0.0
  %323 = vmatpush1.msra.mxu0 0.0
  %324 = vmatprep.subr.mxu0 0.0
  %325 = vmatpush1.msra.mxu0 0.0
  %326 = vmatprep.subr.mxu0 0.0
  %327 = vmatpush1.msra.mxu0 0.0
  %328 = vmatprep.subr.mxu0 0.0
  %329 = vmatpush1.msra.mxu0 0.0
  %330 = vmatprep.subr.mxu0 0.0
  %331 = vmatpush1.msra.mxu0 0.0
  %332 = vmatprep.subr.mxu0 0.0
  %333 = vmatpush1.msra.mxu0 0.0
  %334 = vmatprep.subr.mxu0 0.0
  %335 = vmatpush1.msra.mxu0 0.0
  %336 = vmatprep.subr.mxu0 0.0
  %337 = vmatpush1.msra.mxu0 0.0
  %338 = vmatprep.subr.mxu0 0.0
  %339 = vmatpush1.msra.mxu0 0.0
  %340 = vmatprep.subr.mxu0 0.0
  %341 = vmatpush1.msra.mxu0 0.0
  %342 = vmatprep.subr.mxu0 0.0
  %343 = vmatpush1.msra.mxu0 0.0
  %344 = vmatprep.subr.mxu0 0.0
  %345 = vmatpush1.msra.mxu0 0.0
  %346 = vmatprep.subr.mxu0 0.0
  %347 = vmatpush1.msra.mxu0 %v114
  %348 = vmatprep.subr.mxu0 0.0
  %349 = vmatpush1.msra.mxu0 %v113
  %350 = vmatprep.subr.mxu0 0.0
  %351 = vmatpush1.msra.mxu0 %v112
  %352 = vmatprep.subr.mxu0 0.0
  %353 = vmatpush1.msra.mxu0 %v111
  %354 = vmatprep.subr.mxu0 0.0
  %355 = vmatpush2.msra.mxu0 0.0
  %356 = vmatprep.subr.mxu0 0.0
  %357 = vmatpush2.msra.mxu0 0.0
  %358 = vmatprep.subr.mxu0 0.0
  %359 = vmatpush2.msra.mxu0 0.0
  %360 = vmatprep.subr.mxu0 0.0
  %361 = vmatpush2.msra.mxu0 0.0
  %362 = vmatprep.subr.mxu0 0.0
  %363 = vmatpush2.msra.mxu0 0.0
  %364 = vmatprep.subr.mxu0 0.0
  %365 = vmatpush2.msra.mxu0 0.0
  %366 = vmatprep.subr.mxu0 0.0
  %367 = vmatpush2.msra.mxu0 0.0
  %368 = vmatprep.subr.mxu0 0.0
  %369 = vmatpush2.msra.mxu0 0.0
  %370 = vmatprep.subr.mxu0 0.0
  %371 = vmatpush2.msra.mxu0 0.0
  %372 = vmatprep.subr.mxu0 0.0
  %373 = vmatpush2.msra.mxu0 0.0
  %374 = vmatprep.subr.mxu0 0.0
  %375 = vmatpush2.msra.mxu0 0.0
  %376 = vmatprep.subr.mxu0 0.0
  %377 = vmatpush2.msra.mxu0 0.0
  %378 = vmatprep.subr.mxu0 0.0
  %379 = vmatpush2.msra.mxu0 0.0
  %380 = vmatprep.subr.mxu0 0.0
  %381 = vmatpush2.msra.mxu0 0.0
  %382 = vmatprep.subr.mxu0 0.0
  %383 = vmatpush2.msra.mxu0 0.0
  %384 = vmatprep.subr.mxu0 0.0
  %385 = vmatpush2.msra.mxu0 0.0
  %386 = vmatprep.mubr.f32.mxu0 0.0
  %387 = vmatmul.mubr.f32.gmra.mxu0 %v320
  %v388 = vpop.f32.mrf.mxu0
  %v389 = vadd.f32 %v316, %v388
  %v390 = vpop.f32.mrf.mxu0
  %391 = vdwg.mxu0
  %v392 = vxor.u32 %v389, 2147483648
  %v393 = vmul.f32 %v392, 1.442695
  %v394 = vpow.pop %v393
  %v395 = vadd.f32 %v394, 1.0
  %v396 = vrcp.pop %v395
  %v397 = vmul.f32 1.0, %v396
  %v398 = vtanh.pop %v389
  %v399 = vmul.f32 %v397, %v308
  %401 = vrot.lane.b32.xlu0 %v398, 64
  %v402 = vpop.permute.xlu0 %401
  %v404 = vmul.f32 %v397, %v402
  %406 = vrot.lane.b32.xlu0 %v404, 32
  %v407 = vpop.permute.xlu0 %406
  %v409 = vadd.f32 %v399, %v407
  %v410 = vtanh.pop %v409
  %412 = vrot.lane.b32.xlu0 %v410, 64
  %v413 = vpop.permute.xlu0 %412
  %v415 = vmul.f32 %v397, %v413
  %s416 = scalar_lea.vmem [#allocation2], 6
  %v417 = vld [vmem:[%s416] sm:$0x3]
  %419 = vrot.lane.b32.xlu0 %v415, 32
  %v420 = vpop.permute.xlu0 %419
  %v421 = vsel %vm116, %v420, 0
  %423 = vmatprep.subr.mxu0 0.0
  %424 = vmatpush1.msra.mxu0 0.0
  %425 = vmatprep.subr.mxu0 0.0
  %426 = vmatpush1.msra.mxu0 0.0
  %427 = vmatprep.subr.mxu0 0.0
  %428 = vmatpush1.msra.mxu0 0.0
  %429 = vmatprep.subr.mxu0 0.0
  %430 = vmatpush1.msra.mxu0 0.0
  %431 = vmatprep.subr.mxu0 0.0
  %432 = vmatpush1.msra.mxu0 0.0
  %433 = vmatprep.subr.mxu0 0.0
  %434 = vmatpush1.msra.mxu0 0.0
  %435 = vmatprep.subr.mxu0 0.0
  %436 = vmatpush1.msra.mxu0 0.0
  %437 = vmatprep.subr.mxu0 0.0
  %438 = vmatpush1.msra.mxu0 0.0
  %439 = vmatprep.subr.mxu0 0.0
  %440 = vmatpush1.msra.mxu0 0.0
  %441 = vmatprep.subr.mxu0 0.0
  %442 = vmatpush1.msra.mxu0 0.0
  %443 = vmatprep.subr.mxu0 0.0
  %444 = vmatpush1.msra.mxu0 0.0
  %445 = vmatprep.subr.mxu0 0.0
  %446 = vmatpush1.msra.mxu0 0.0
  %447 = vmatprep.subr.mxu0 0.0
  %448 = vmatpush1.msra.mxu0 %v114
  %449 = vmatprep.subr.mxu0 0.0
  %450 = vmatpush1.msra.mxu0 %v113
  %451 = vmatprep.subr.mxu0 0.0
  %452 = vmatpush1.msra.mxu0 %v112
  %453 = vmatprep.subr.mxu0 0.0
  %454 = vmatpush1.msra.mxu0 %v111
  %455 = vmatprep.subr.mxu0 0.0
  %456 = vmatpush2.msra.mxu0 0.0
  %457 = vmatprep.subr.mxu0 0.0
  %458 = vmatpush2.msra.mxu0 0.0
  %459 = vmatprep.subr.mxu0 0.0
  %460 = vmatpush2.msra.mxu0 0.0
  %461 = vmatprep.subr.mxu0 0.0
  %462 = vmatpush2.msra.mxu0 0.0
  %463 = vmatprep.subr.mxu0 0.0
  %464 = vmatpush2.msra.mxu0 0.0
  %465 = vmatprep.subr.mxu0 0.0
  %466 = vmatpush2.msra.mxu0 0.0
  %467 = vmatprep.subr.mxu0 0.0
  %468 = vmatpush2.msra.mxu0 0.0
  %469 = vmatprep.subr.mxu0 0.0
  %470 = vmatpush2.msra.mxu0 0.0
  %471 = vmatprep.subr.mxu0 0.0
  %472 = vmatpush2.msra.mxu0 0.0
  %473 = vmatprep.subr.mxu0 0.0
  %474 = vmatpush2.msra.mxu0 0.0
  %475 = vmatprep.subr.mxu0 0.0
  %476 = vmatpush2.msra.mxu0 0.0
  %477 = vmatprep.subr.mxu0 0.0
  %478 = vmatpush2.msra.mxu0 0.0
  %479 = vmatprep.subr.mxu0 0.0
  %480 = vmatpush2.msra.mxu0 0.0
  %481 = vmatprep.subr.mxu0 0.0
  %482 = vmatpush2.msra.mxu0 0.0
  %483 = vmatprep.subr.mxu0 0.0
  %484 = vmatpush2.msra.mxu0 0.0
  %485 = vmatprep.subr.mxu0 0.0
  %486 = vmatpush2.msra.mxu0 0.0
  %487 = vmatprep.mubr.f32.mxu0 0.0
  %488 = vmatmul.mubr.f32.gmra.mxu0 %v421
  %v489 = vpop.f32.mrf.mxu0
  %v490 = vadd.f32 %v417, %v489
  %v491 = vpop.f32.mrf.mxu0
  %492 = vdwg.mxu0
  %v493 = vxor.u32 %v490, 2147483648
  %v494 = vmul.f32 %v493, 1.442695
  %v495 = vpow.pop %v494
  %v496 = vadd.f32 %v495, 1.0
  %v497 = vrcp.pop %v496
  %v498 = vmul.f32 1.0, %v497
  %v499 = vtanh.pop %v490
  %v500 = vmul.f32 %v498, %v409
  %502 = vrot.lane.b32.xlu0 %v499, 64
  %v503 = vpop.permute.xlu0 %502
  %v505 = vmul.f32 %v498, %v503
  %507 = vrot.lane.b32.xlu0 %v505, 32
  %v508 = vpop.permute.xlu0 %507
  %v510 = vadd.f32 %v500, %v508
  %v511 = vtanh.pop %v510
  %513 = vrot.lane.b32.xlu0 %v511, 64
  %v514 = vpop.permute.xlu0 %513
  %v516 = vmul.f32 %v498, %v514
  %s517 = scalar_lea.vmem [#allocation2], 8
  %v518 = vld [vmem:[%s517] sm:$0x3]
  %520 = vrot.lane.b32.xlu0 %v516, 32
  %v521 = vpop.permute.xlu0 %520
  %v522 = vsel %vm116, %v521, 0
  %524 = vmatprep.subr.mxu0 0.0
  %525 = vmatpush1.msra.mxu0 0.0
  %526 = vmatprep.subr.mxu0 0.0
  %527 = vmatpush1.msra.mxu0 0.0
  %528 = vmatprep.subr.mxu0 0.0
  %529 = vmatpush1.msra.mxu0 0.0
  %530 = vmatprep.subr.mxu0 0.0
  %531 = vmatpush1.msra.mxu0 0.0
  %532 = vmatprep.subr.mxu0 0.0
  %533 = vmatpush1.msra.mxu0 0.0
  %534 = vmatprep.subr.mxu0 0.0
  %535 = vmatpush1.msra.mxu0 0.0
  %536 = vmatprep.subr.mxu0 0.0
  %537 = vmatpush1.msra.mxu0 0.0
  %538 = vmatprep.subr.mxu0 0.0
  %539 = vmatpush1.msra.mxu0 0.0
  %540 = vmatprep.subr.mxu0 0.0
  %541 = vmatpush1.msra.mxu0 0.0
  %542 = vmatprep.subr.mxu0 0.0
  %543 = vmatpush1.msra.mxu0 0.0
  %544 = vmatprep.subr.mxu0 0.0
  %545 = vmatpush1.msra.mxu0 0.0
  %546 = vmatprep.subr.mxu0 0.0
  %547 = vmatpush1.msra.mxu0 0.0
  %548 = vmatprep.subr.mxu0 0.0
  %549 = vmatpush1.msra.mxu0 %v114
  %550 = vmatprep.subr.mxu0 0.0
  %551 = vmatpush1.msra.mxu0 %v113
  %552 = vmatprep.subr.mxu0 0.0
  %553 = vmatpush1.msra.mxu0 %v112
  %554 = vmatprep.subr.mxu0 0.0
  %555 = vmatpush1.msra.mxu0 %v111
  %556 = vmatprep.subr.mxu0 0.0
  %557 = vmatpush2.msra.mxu0 0.0
  %558 = vmatprep.subr.mxu0 0.0
  %559 = vmatpush2.msra.mxu0 0.0
  %560 = vmatprep.subr.mxu0 0.0
  %561 = vmatpush2.msra.mxu0 0.0
  %562 = vmatprep.subr.mxu0 0.0
  %563 = vmatpush2.msra.mxu0 0.0
  %564 = vmatprep.subr.mxu0 0.0
  %565 = vmatpush2.msra.mxu0 0.0
  %566 = vmatprep.subr.mxu0 0.0
  %567 = vmatpush2.msra.mxu0 0.0
  %568 = vmatprep.subr.mxu0 0.0
  %569 = vmatpush2.msra.mxu0 0.0
  %570 = vmatprep.subr.mxu0 0.0
  %571 = vmatpush2.msra.mxu0 0.0
  %572 = vmatprep.subr.mxu0 0.0
  %573 = vmatpush2.msra.mxu0 0.0
  %574 = vmatprep.subr.mxu0 0.0
  %575 = vmatpush2.msra.mxu0 0.0
  %576 = vmatprep.subr.mxu0 0.0
  %577 = vmatpush2.msra.mxu0 0.0
  %578 = vmatprep.subr.mxu0 0.0
  %579 = vmatpush2.msra.mxu0 0.0
  %580 = vmatprep.subr.mxu0 0.0
  %581 = vmatpush2.msra.mxu0 0.0
  %582 = vmatprep.subr.mxu0 0.0
  %583 = vmatpush2.msra.mxu0 0.0
  %584 = vmatprep.subr.mxu0 0.0
  %585 = vmatpush2.msra.mxu0 0.0
  %586 = vmatprep.subr.mxu0 0.0
  %587 = vmatpush2.msra.mxu0 0.0
  %588 = vmatprep.mubr.f32.mxu0 0.0
  %589 = vmatmul.mubr.f32.gmra.mxu0 %v522
  %v590 = vpop.f32.mrf.mxu0
  %v591 = vadd.f32 %v518, %v590
  %v592 = vpop.f32.mrf.mxu0
  %593 = vdwg.mxu0
  %v594 = vxor.u32 %v591, 2147483648
  %v595 = vmul.f32 %v594, 1.442695
  %v596 = vpow.pop %v595
  %v597 = vadd.f32 %v596, 1.0
  %v598 = vrcp.pop %v597
  %v599 = vmul.f32 1.0, %v598
  %v600 = vtanh.pop %v591
  %v601 = vmul.f32 %v599, %v510
  %603 = vrot.lane.b32.xlu0 %v600, 64
  %v604 = vpop.permute.xlu0 %603
  %v606 = vmul.f32 %v599, %v604
  %608 = vrot.lane.b32.xlu0 %v606, 32
  %v609 = vpop.permute.xlu0 %608
  %v611 = vadd.f32 %v601, %v609
  %v612 = vtanh.pop %v611
  %614 = vrot.lane.b32.xlu0 %v612, 64
  %v615 = vpop.permute.xlu0 %614
  %v617 = vmul.f32 %v599, %v615
  %s618 = scalar_lea.vmem [#allocation2], 10
  %v619 = vld [vmem:[%s618] sm:$0x3]
  %621 = vrot.lane.b32.xlu0 %v617, 32
  %v622 = vpop.permute.xlu0 %621
  %v623 = vsel %vm116, %v622, 0
  %625 = vmatprep.subr.mxu0 0.0
  %626 = vmatpush1.msra.mxu0 0.0
  %627 = vmatprep.subr.mxu0 0.0
  %628 = vmatpush1.msra.mxu0 0.0
  %629 = vmatprep.subr.mxu0 0.0
  %630 = vmatpush1.msra.mxu0 0.0
  %631 = vmatprep.subr.mxu0 0.0
  %632 = vmatpush1.msra.mxu0 0.0
  %633 = vmatprep.subr.mxu0 0.0
  %634 = vmatpush1.msra.mxu0 0.0
  %635 = vmatprep.subr.mxu0 0.0
  %636 = vmatpush1.msra.mxu0 0.0
  %637 = vmatprep.subr.mxu0 0.0
  %638 = vmatpush1.msra.mxu0 0.0
  %639 = vmatprep.subr.mxu0 0.0
  %640 = vmatpush1.msra.mxu0 0.0
  %641 = vmatprep.subr.mxu0 0.0
  %642 = vmatpush1.msra.mxu0 0.0
  %643 = vmatprep.subr.mxu0 0.0
  %644 = vmatpush1.msra.mxu0 0.0
  %645 = vmatprep.subr.mxu0 0.0
  %646 = vmatpush1.msra.mxu0 0.0
  %647 = vmatprep.subr.mxu0 0.0
  %648 = vmatpush1.msra.mxu0 0.0
  %649 = vmatprep.subr.mxu0 0.0
  %650 = vmatpush1.msra.mxu0 %v114
  %651 = vmatprep.subr.mxu0 0.0
  %652 = vmatpush1.msra.mxu0 %v113
  %653 = vmatprep.subr.mxu0 0.0
  %654 = vmatpush1.msra.mxu0 %v112
  %655 = vmatprep.subr.mxu0 0.0
  %656 = vmatpush1.msra.mxu0 %v111
  %657 = vmatprep.subr.mxu0 0.0
  %658 = vmatpush2.msra.mxu0 0.0
  %659 = vmatprep.subr.mxu0 0.0
  %660 = vmatpush2.msra.mxu0 0.0
  %661 = vmatprep.subr.mxu0 0.0
  %662 = vmatpush2.msra.mxu0 0.0
  %663 = vmatprep.subr.mxu0 0.0
  %664 = vmatpush2.msra.mxu0 0.0
  %665 = vmatprep.subr.mxu0 0.0
  %666 = vmatpush2.msra.mxu0 0.0
  %667 = vmatprep.subr.mxu0 0.0
  %668 = vmatpush2.msra.mxu0 0.0
  %669 = vmatprep.subr.mxu0 0.0
  %670 = vmatpush2.msra.mxu0 0.0
  %671 = vmatprep.subr.mxu0 0.0
  %672 = vmatpush2.msra.mxu0 0.0
  %673 = vmatprep.subr.mxu0 0.0
  %674 = vmatpush2.msra.mxu0 0.0
  %675 = vmatprep.subr.mxu0 0.0
  %676 = vmatpush2.msra.mxu0 0.0
  %677 = vmatprep.subr.mxu0 0.0
  %678 = vmatpush2.msra.mxu0 0.0
  %679 = vmatprep.subr.mxu0 0.0
  %680 = vmatpush2.msra.mxu0 0.0
  %681 = vmatprep.subr.mxu0 0.0
  %682 = vmatpush2.msra.mxu0 0.0
  %683 = vmatprep.subr.mxu0 0.0
  %684 = vmatpush2.msra.mxu0 0.0
  %685 = vmatprep.subr.mxu0 0.0
  %686 = vmatpush2.msra.mxu0 0.0
  %687 = vmatprep.subr.mxu0 0.0
  %688 = vmatpush2.msra.mxu0 0.0
  %689 = vmatprep.mubr.f32.mxu0 0.0
  %690 = vmatmul.mubr.f32.gmra.mxu0 %v623
  %v691 = vpop.f32.mrf.mxu0
  %v692 = vadd.f32 %v619, %v691
  %v693 = vpop.f32.mrf.mxu0
  %694 = vdwg.mxu0
  %v695 = vxor.u32 %v692, 2147483648
  %v696 = vmul.f32 %v695, 1.442695
  %v697 = vpow.pop %v696
  %v698 = vadd.f32 %v697, 1.0
  %v699 = vrcp.pop %v698
  %v700 = vmul.f32 1.0, %v699
  %v701 = vtanh.pop %v692
  %v702 = vmul.f32 %v700, %v611
  %704 = vrot.lane.b32.xlu0 %v701, 64
  %v705 = vpop.permute.xlu0 %704
  %v707 = vmul.f32 %v700, %v705
  %709 = vrot.lane.b32.xlu0 %v707, 32
  %v710 = vpop.permute.xlu0 %709
  %v712 = vadd.f32 %v702, %v710
  %v713 = vtanh.pop %v712
  %715 = vrot.lane.b32.xlu0 %v713, 64
  %v716 = vpop.permute.xlu0 %715
  %v718 = vmul.f32 %v700, %v716
  %s719 = scalar_lea.vmem [#allocation2], 12
  %v720 = vld [vmem:[%s719] sm:$0x3]
  %722 = vrot.lane.b32.xlu0 %v718, 32
  %v723 = vpop.permute.xlu0 %722
  %v724 = vsel %vm116, %v723, 0
  %726 = vmatprep.subr.mxu0 0.0
  %727 = vmatpush1.msra.mxu0 0.0
  %728 = vmatprep.subr.mxu0 0.0
  %729 = vmatpush1.msra.mxu0 0.0
  %730 = vmatprep.subr.mxu0 0.0
  %731 = vmatpush1.msra.mxu0 0.0
  %732 = vmatprep.subr.mxu0 0.0
  %733 = vmatpush1.msra.mxu0 0.0
  %734 = vmatprep.subr.mxu0 0.0
  %735 = vmatpush1.msra.mxu0 0.0
  %736 = vmatprep.subr.mxu0 0.0
  %737 = vmatpush1.msra.mxu0 0.0
  %738 = vmatprep.subr.mxu0 0.0
  %739 = vmatpush1.msra.mxu0 0.0
  %740 = vmatprep.subr.mxu0 0.0
  %741 = vmatpush1.msra.mxu0 0.0
  %742 = vmatprep.subr.mxu0 0.0
  %743 = vmatpush1.msra.mxu0 0.0
  %744 = vmatprep.subr.mxu0 0.0
  %745 = vmatpush1.msra.mxu0 0.0
  %746 = vmatprep.subr.mxu0 0.0
  %747 = vmatpush1.msra.mxu0 0.0
  %748 = vmatprep.subr.mxu0 0.0
  %749 = vmatpush1.msra.mxu0 0.0
  %750 = vmatprep.subr.mxu0 0.0
  %751 = vmatpush1.msra.mxu0 %v114
  %752 = vmatprep.subr.mxu0 0.0
  %753 = vmatpush1.msra.mxu0 %v113
  %754 = vmatprep.subr.mxu0 0.0
  %755 = vmatpush1.msra.mxu0 %v112
  %756 = vmatprep.subr.mxu0 0.0
  %757 = vmatpush1.msra.mxu0 %v111
  %758 = vmatprep.subr.mxu0 0.0
  %759 = vmatpush2.msra.mxu0 0.0
  %760 = vmatprep.subr.mxu0 0.0
  %761 = vmatpush2.msra.mxu0 0.0
  %762 = vmatprep.subr.mxu0 0.0
  %763 = vmatpush2.msra.mxu0 0.0
  %764 = vmatprep.subr.mxu0 0.0
  %765 = vmatpush2.msra.mxu0 0.0
  %766 = vmatprep.subr.mxu0 0.0
  %767 = vmatpush2.msra.mxu0 0.0
  %768 = vmatprep.subr.mxu0 0.0
  %769 = vmatpush2.msra.mxu0 0.0
  %770 = vmatprep.subr.mxu0 0.0
  %771 = vmatpush2.msra.mxu0 0.0
  %772 = vmatprep.subr.mxu0 0.0
  %773 = vmatpush2.msra.mxu0 0.0
  %774 = vmatprep.subr.mxu0 0.0
  %775 = vmatpush2.msra.mxu0 0.0
  %776 = vmatprep.subr.mxu0 0.0
  %777 = vmatpush2.msra.mxu0 0.0
  %778 = vmatprep.subr.mxu0 0.0
  %779 = vmatpush2.msra.mxu0 0.0
  %780 = vmatprep.subr.mxu0 0.0
  %781 = vmatpush2.msra.mxu0 0.0
  %782 = vmatprep.subr.mxu0 0.0
  %783 = vmatpush2.msra.mxu0 0.0
  %784 = vmatprep.subr.mxu0 0.0
  %785 = vmatpush2.msra.mxu0 0.0
  %786 = vmatprep.subr.mxu0 0.0
  %787 = vmatpush2.msra.mxu0 0.0
  %788 = vmatprep.subr.mxu0 0.0
  %789 = vmatpush2.msra.mxu0 0.0
  %790 = vmatprep.mubr.f32.mxu0 0.0
  %791 = vmatmul.mubr.f32.gmra.mxu0 %v724
  %v792 = vpop.f32.mrf.mxu0
  %v793 = vadd.f32 %v720, %v792
  %v794 = vpop.f32.mrf.mxu0
  %795 = vdwg.mxu0
  %v796 = vxor.u32 %v793, 2147483648
  %v797 = vmul.f32 %v796, 1.442695
  %v798 = vpow.pop %v797
  %v799 = vadd.f32 %v798, 1.0
  %v800 = vrcp.pop %v799
  %v801 = vmul.f32 1.0, %v800
  %v802 = vtanh.pop %v793
  %v803 = vmul.f32 %v801, %v712
  %805 = vrot.lane.b32.xlu0 %v802, 64
  %v806 = vpop.permute.xlu0 %805
  %v808 = vmul.f32 %v801, %v806
  %810 = vrot.lane.b32.xlu0 %v808, 32
  %v811 = vpop.permute.xlu0 %810
  %v813 = vadd.f32 %v803, %v811
  %v814 = vtanh.pop %v813
  %816 = vrot.lane.b32.xlu0 %v814, 64
  %v817 = vpop.permute.xlu0 %816
  %v819 = vmul.f32 %v801, %v817
  %s820 = scalar_lea.vmem [#allocation2], 14
  %v821 = vld [vmem:[%s820] sm:$0x3]
  %823 = vrot.lane.b32.xlu0 %v819, 32
  %v824 = vpop.permute.xlu0 %823
  %v825 = vsel %vm116, %v824, 0
  %827 = vmatprep.subr.mxu0 0.0
  %828 = vmatpush1.msra.mxu0 0.0
  %829 = vmatprep.subr.mxu0 0.0
  %830 = vmatpush1.msra.mxu0 0.0
  %831 = vmatprep.subr.mxu0 0.0
  %832 = vmatpush1.msra.mxu0 0.0
  %833 = vmatprep.subr.mxu0 0.0
  %834 = vmatpush1.msra.mxu0 0.0
  %835 = vmatprep.subr.mxu0 0.0
  %836 = vmatpush1.msra.mxu0 0.0
  %837 = vmatprep.subr.mxu0 0.0
  %838 = vmatpush1.msra.mxu0 0.0
  %839 = vmatprep.subr.mxu0 0.0
  %840 = vmatpush1.msra.mxu0 0.0
  %841 = vmatprep.subr.mxu0 0.0
  %842 = vmatpush1.msra.mxu0 0.0
  %843 = vmatprep.subr.mxu0 0.0
  %844 = vmatpush1.msra.mxu0 0.0
  %845 = vmatprep.subr.mxu0 0.0
  %846 = vmatpush1.msra.mxu0 0.0
  %847 = vmatprep.subr.mxu0 0.0
  %848 = vmatpush1.msra.mxu0 0.0
  %849 = vmatprep.subr.mxu0 0.0
  %850 = vmatpush1.msra.mxu0 0.0
  %851 = vmatprep.subr.mxu0 0.0
  %852 = vmatpush1.msra.mxu0 %v114
  %853 = vmatprep.subr.mxu0 0.0
  %854 = vmatpush1.msra.mxu0 %v113
  %855 = vmatprep.subr.mxu0 0.0
  %856 = vmatpush1.msra.mxu0 %v112
  %857 = vmatprep.subr.mxu0 0.0
  %858 = vmatpush1.msra.mxu0 %v111
  %859 = vmatprep.subr.mxu0 0.0
  %860 = vmatpush2.msra.mxu0 0.0
  %861 = vmatprep.subr.mxu0 0.0
  %862 = vmatpush2.msra.mxu0 0.0
  %863 = vmatprep.subr.mxu0 0.0
  %864 = vmatpush2.msra.mxu0 0.0
  %865 = vmatprep.subr.mxu0 0.0
  %866 = vmatpush2.msra.mxu0 0.0
  %867 = vmatprep.subr.mxu0 0.0
  %868 = vmatpush2.msra.mxu0 0.0
  %869 = vmatprep.subr.mxu0 0.0
  %870 = vmatpush2.msra.mxu0 0.0
  %871 = vmatprep.subr.mxu0 0.0
  %872 = vmatpush2.msra.mxu0 0.0
  %873 = vmatprep.subr.mxu0 0.0
  %874 = vmatpush2.msra.mxu0 0.0
  %875 = vmatprep.subr.mxu0 0.0
  %876 = vmatpush2.msra.mxu0 0.0
  %877 = vmatprep.subr.mxu0 0.0
  %878 = vmatpush2.msra.mxu0 0.0
  %879 = vmatprep.subr.mxu0 0.0
  %880 = vmatpush2.msra.mxu0 0.0
  %881 = vmatprep.subr.mxu0 0.0
  %882 = vmatpush2.msra.mxu0 0.0
  %883 = vmatprep.subr.mxu0 0.0
  %884 = vmatpush2.msra.mxu0 0.0
  %885 = vmatprep.subr.mxu0 0.0
  %886 = vmatpush2.msra.mxu0 0.0
  %887 = vmatprep.subr.mxu0 0.0
  %888 = vmatpush2.msra.mxu0 0.0
  %889 = vmatprep.subr.mxu0 0.0
  %890 = vmatpush2.msra.mxu0 0.0
  %891 = vmatprep.mubr.f32.mxu0 0.0
  %892 = vmatmul.mubr.f32.gmra.mxu0 %v825
  %v893 = vpop.f32.mrf.mxu0
  %v894 = vadd.f32 %v821, %v893
  %v895 = vpop.f32.mrf.mxu0
  %896 = vdwg.mxu0
  %v897 = vxor.u32 %v894, 2147483648
  %v898 = vmul.f32 %v897, 1.442695
  %v899 = vpow.pop %v898
  %v900 = vadd.f32 %v899, 1.0
  %v901 = vrcp.pop %v900
  %v902 = vmul.f32 1.0, %v901
  %v903 = vtanh.pop %v894
  %v904 = vmul.f32 %v902, %v813
  %906 = vrot.lane.b32.xlu0 %v903, 64
  %v907 = vpop.permute.xlu0 %906
  %v909 = vmul.f32 %v902, %v907
  %911 = vrot.lane.b32.xlu0 %v909, 32
  %v912 = vpop.permute.xlu0 %911
  %v914 = vadd.f32 %v904, %v912
  %v915 = vtanh.pop %v914
  %917 = vrot.lane.b32.xlu0 %v915, 64
  %v918 = vpop.permute.xlu0 %917
  %v920 = vmul.f32 %v902, %v918
  %v921 = vld [vmem:[%s4] sm:$0xff]
  %v922 = vld [vmem:[%s4 + $0x8] sm:$0xff]
  %v923 = vld [vmem:[%s4 + $0x10] sm:$0xff]
  %v924 = vld [vmem:[%s4 + $0x18] sm:$0xff]
  %v925 = vld [vmem:[#allocation3] sm:$0x1]
  %v927 = vlaneseq
  %v928 = vshrl.u32 %v927, 7
  %v929 = vsub.s32 0, %v928
  %v930 = vrot.slane %v925, %v929
  %933 = vrot.lane.b32.xlu0 %v920, 32
  %v934 = vpop.permute.xlu0 %933
  %v935 = vsel %vm116, %v934, 0
  %937 = vmatprep.subr.mxu0 0.0
  %938 = vmatpush1.msra.mxu0 0.0
  %939 = vmatprep.subr.mxu0 0.0
  %940 = vmatpush1.msra.mxu0 0.0
  %941 = vmatprep.subr.mxu0 0.0
  %942 = vmatpush1.msra.mxu0 0.0
  %943 = vmatprep.subr.mxu0 0.0
  %944 = vmatpush1.msra.mxu0 0.0
  %945 = vmatprep.subr.mxu0 0.0
  %946 = vmatpush1.msra.mxu0 0.0
  %947 = vmatprep.subr.mxu0 0.0
  %948 = vmatpush1.msra.mxu0 0.0
  %949 = vmatprep.subr.mxu0 0.0
  %950 = vmatpush1.msra.mxu0 0.0
  %951 = vmatprep.subr.mxu0 0.0
  %952 = vmatpush1.msra.mxu0 0.0
  %953 = vmatprep.subr.mxu0 0.0
  %954 = vmatpush1.msra.mxu0 0.0
  %955 = vmatprep.subr.mxu0 0.0
  %956 = vmatpush1.msra.mxu0 0.0
  %957 = vmatprep.subr.mxu0 0.0
  %958 = vmatpush1.msra.mxu0 0.0
  %959 = vmatprep.subr.mxu0 0.0
  %960 = vmatpush1.msra.mxu0 0.0
  %961 = vmatprep.subr.mxu0 0.0
  %962 = vmatpush1.msra.mxu0 %v924
  %963 = vmatprep.subr.mxu0 0.0
  %964 = vmatpush1.msra.mxu0 %v923
  %965 = vmatprep.subr.mxu0 0.0
  %966 = vmatpush1.msra.mxu0 %v922
  %967 = vmatprep.subr.mxu0 0.0
  %968 = vmatpush1.msra.mxu0 %v921
  %969 = vmatprep.subr.mxu0 0.0
  %970 = vmatpush2.msra.mxu0 0.0
  %971 = vmatprep.subr.mxu0 0.0
  %972 = vmatpush2.msra.mxu0 0.0
  %973 = vmatprep.subr.mxu0 0.0
  %974 = vmatpush2.msra.mxu0 0.0
  %975 = vmatprep.subr.mxu0 0.0
  %976 = vmatpush2.msra.mxu0 0.0
  %977 = vmatprep.subr.mxu0 0.0
  %978 = vmatpush2.msra.mxu0 0.0
  %979 = vmatprep.subr.mxu0 0.0
  %980 = vmatpush2.msra.mxu0 0.0
  %981 = vmatprep.subr.mxu0 0.0
  %982 = vmatpush2.msra.mxu0 0.0
  %983 = vmatprep.subr.mxu0 0.0
  %984 = vmatpush2.msra.mxu0 0.0
  %985 = vmatprep.subr.mxu0 0.0
  %986 = vmatpush2.msra.mxu0 0.0
  %987 = vmatprep.subr.mxu0 0.0
  %988 = vmatpush2.msra.mxu0 0.0
  %989 = vmatprep.subr.mxu0 0.0
  %990 = vmatpush2.msra.mxu0 0.0
  %991 = vmatprep.subr.mxu0 0.0
  %992 = vmatpush2.msra.mxu0 0.0
  %993 = vmatprep.subr.mxu0 0.0
  %994 = vmatpush2.msra.mxu0 0.0
  %995 = vmatprep.subr.mxu0 0.0
  %996 = vmatpush2.msra.mxu0 0.0
  %997 = vmatprep.subr.mxu0 0.0
  %998 = vmatpush2.msra.mxu0 0.0
  %999 = vmatprep.subr.mxu0 0.0
  %1000 = vmatpush2.msra.mxu0 0.0
  %1001 = vmatprep.mubr.f32.mxu0 0.0
  %1002 = vmatmul.mubr.f32.gmra.mxu0 %v935
  %v1003 = vpop.f32.mrf.mxu0
  %v1004 = vadd.f32 %v930, %v1003
  %v1005 = vpop.f32.mrf.mxu0
  %1006 = vdwg.mxu0
  %vm1007 = vcmask 1024
  %1008 = vst.msk [vmem:[%s6] sm:$0x3] %vm1007, %v1004
  // Predicated region
  $region26: #{tpu_custom_call.1} parent=0 // pred_check
    _
  $region27: #{tpu_custom_call.1} parent=0 // pred_check_branch
    %1010 = sbr.rel (0) target = $region29
  $region28: #{tpu_custom_call.1} parent=0 // pred_region
    _
  $region29: #{tpu_custom_call.1} parent=0 // pred_fallthru
    _
  // Predicated region
  $region30: #{tpu_custom_call.1} parent=0 // pred_check
    _
  $region31: #{tpu_custom_call.1} parent=0 // pred_check_branch
    %1012 = sbr.rel (0) target = $region33
  $region32: #{tpu_custom_call.1} parent=0 // pred_region
    _
  $region33: #{tpu_custom_call.1} parent=0 // pred_fallthru
    _

</llo_original>
